<compile_context>
chip_gen: v5e
topology: v5e:2x2
jax: 0.10.0
libtpu: 0.0.40
codegen_flags: <defaults>
</compile_context>

<pallas_src>
import jax
import jax.numpy as jnp
from jax import lax
from jax.experimental import pallas as pl
from jax.experimental.pallas import tpu as pltpu


# ------------------------- fused SupCon forward kernel -----------------------
def supcon_kernel(x_ref, wenc_ref, benc_ref, w1_ref, b1_ref, w2_ref, b2_ref,
                  o_ref):
    # x_ref:    (Bb, C, HW)  NCHW block, HW on the lane axis
    # wenc_ref: (F, C)       1x1-conv weight, pre-transposed once on host
    # benc_ref: (F, 1)       conv bias as a column (lane-broadcast)
    # w1_ref:   (F, F), b1_ref: (1, F)   head Linear 1
    # w2_ref:   (F, P), b2_ref: (1, P)   head Linear 2
    # o_ref:    (1, Bb, P)   normalized projections (P=128, lane-dense)
    bb, _, hw = x_ref.shape

    # Hoist all weight/bias reads out of the per-image loop.
    wenc = wenc_ref[...]
    benc = benc_ref[...]
    w1 = w1_ref[...]
    b1 = b1_ref[...]
    w2 = w2_ref[...]
    b2 = b2_ref[...]
    # Mean-pool as an MXU matvec; the 1/HW scale is folded into the constant.
    pool = jnp.full((1, hw), 1.0 / hw, dtype=jnp.float32)

    for i in range(bb):  # static unroll (bb == 2)
        xi = x_ref[i]                                                  # (C, HW)
        # encoder: 1x1 conv + bias + ReLU, HW stays on the lane axis
        h = jnp.dot(wenc, xi, preferred_element_type=jnp.float32) + benc
        h = jnp.maximum(h, 0.0)                                        # (F, HW)
        # global average pool over HW (lane-axis contraction) -> (1, F) row
        feat = lax.dot_general(
            pool, h, (((1,), (1,)), ((), ())),
            preferred_element_type=jnp.float32)                        # (1, F)
        # projection head: Linear -> ReLU -> Linear
        h1 = jnp.maximum(
            jnp.dot(feat, w1, preferred_element_type=jnp.float32) + b1, 0.0)
        z = jnp.dot(h1, w2, preferred_element_type=jnp.float32) + b2   # (1, P)
        # F.normalize(z, dim=1) with eps = 1e-12, via rsqrt (EUP slot)
        ssq = jnp.sum(z * z, axis=1, keepdims=True)                    # (1, 1)
        inv_norm = lax.rsqrt(jnp.maximum(ssq, 1e-24))
        o_ref[0, pl.ds(i, 1), :] = z * inv_norm


def supcon_forward(x_nchw, params, *, block_b=2):
    B, C, H, W = x_nchw.shape
    F_dim = params["enc_w"].shape[1]
    P = params["w2"].shape[1]
    HW = H * W
    assert B % block_b == 0

    # Free reshape: NCHW memory is already (B, C, H*W)-contiguous.
    x3 = x_nchw.reshape(B, C, HW)
    # One-time tiny weight relayouts on host (no activation-sized transposes).
    wenc_t = params["enc_w"].T                 # (F, C)
    benc_col = params["enc_b"].reshape(F_dim, 1)

    nblk = B // block_b
    out = pl.pallas_call(
        supcon_kernel,
        out_shape=jax.ShapeDtypeStruct((nblk, block_b, P), jnp.float32),
        grid=(nblk,),
        in_specs=[
            pl.BlockSpec((block_b, C, HW), lambda i: (i, 0, 0)),
            pl.BlockSpec((F_dim, C), lambda i: (0, 0)),
            pl.BlockSpec((F_dim, 1), lambda i: (0, 0)),
            pl.BlockSpec((F_dim, F_dim), lambda i: (0, 0)),
            pl.BlockSpec((1, F_dim), lambda i: (0, 0)),
            pl.BlockSpec((F_dim, P), lambda i: (0, 0)),
            pl.BlockSpec((1, P), lambda i: (0, 0)),
        ],
        out_specs=pl.BlockSpec((1, block_b, P), lambda i: (i, 0, 0)),
        compiler_params=pltpu.CompilerParams(
            dimension_semantics=("parallel",)),
    )(x3, wenc_t, benc_col,
      params["w1"], params["b1"], params["w2"], params["b2"])
    return out.reshape(B, P)


# ------------------------------ JAX reference --------------------------------
def reference_forward(x_nchw, params):
    B, C, H, W = x_nchw.shape
    x3 = x_nchw.reshape(B, C, H * W)
    h = jnp.maximum(
        jnp.einsum("cf,bcs->bfs", params["enc_w"], x3)
        + params["enc_b"].reshape(1, -1, 1), 0.0)
    feat = jnp.mean(h, axis=2)                                   # encoder(x).squeeze()
    h1 = jnp.maximum(feat @ params["w1"] + params["b1"], 0.0)    # Linear + ReLU
    z = h1 @ params["w2"] + params["b2"]                         # Linear
    norm = jnp.maximum(jnp.linalg.norm(z, axis=1, keepdims=True), 1e-12)
    return z / norm                                              # F.normalize(dim=1)


if __name__ == "__main__":
    # Small synthetic shapes consistent with the module's forward:
    #   x: (B, C, H, W) NCHW, features_dim=32 (stand-in for resnet50's 2048),
    #   projection_dim=128 (module default).
    B, C, H, W = 4, 4, 16, 16
    F_dim, P = 32, 128

    key = jax.random.PRNGKey(0)
    k_x, k_ew, k_eb, k_w1, k_b1, k_w2, k_b2 = jax.random.split(key, 7)

    x = jax.random.normal(k_x, (B, C, H, W), dtype=jnp.float32)
    params = {
        "enc_w": jax.random.normal(k_ew, (C, F_dim), dtype=jnp.float32) * 0.1,
        "enc_b": jax.random.normal(k_eb, (1, F_dim), dtype=jnp.float32) * 0.1,
        "w1": jax.random.normal(k_w1, (F_dim, F_dim), dtype=jnp.float32) * 0.1,
        "b1": jax.random.normal(k_b1, (1, F_dim), dtype=jnp.float32) * 0.1,
        "w2": jax.random.normal(k_w2, (F_dim, P), dtype=jnp.float32) * 0.1,
        "b2": jax.random.normal(k_b2, (1, P), dtype=jnp.float32) * 0.1,
    }

    out = jax.jit(supcon_forward)(x, params)
    out = jax.block_until_ready(out)

    ref = reference_forward(x, params)
    assert out.shape == (B, P), out.shape
    assert jnp.allclose(out, ref, atol=1e-5, rtol=1e-5), "mismatch vs JAX reference"

    print("KERNEL_OK")
</pallas_src>

<mosaic_0001>
module attributes {stable_mosaic.version = 11 : i64} {
  func.func @supcon_kernel(%arg0: i32, %arg1: memref<2x4x256xf32, #tpu.memory_space<vmem>>, %arg2: memref<32x4xf32, #tpu.memory_space<vmem>>, %arg3: memref<32x1xf32, #tpu.memory_space<vmem>>, %arg4: memref<32x32xf32, #tpu.memory_space<vmem>>, %arg5: memref<1x32xf32, #tpu.memory_space<vmem>>, %arg6: memref<32x128xf32, #tpu.memory_space<vmem>>, %arg7: memref<1x128xf32, #tpu.memory_space<vmem>>, %arg8: memref<1x2x128xf32, #tpu.memory_space<vmem>>) attributes {dimension_semantics = [#tpu.dimension_semantics<parallel>], iteration_bounds = array<i64: 2>, scalar_prefetch = 0 : i64, scratch_operands = 0 : i64, tpu.core_type = #tpu.core_type<tc>, window_params = [{transform_indices = @transform_0, window_bounds = array<i64: 2, 4, 256>}, {pipeline_mode = #tpu.pipeline_mode<synchronous>, transform_indices = @transform_1, window_bounds = array<i64: 32, 4>}, {pipeline_mode = #tpu.pipeline_mode<synchronous>, transform_indices = @transform_2, window_bounds = array<i64: 32, 1>}, {pipeline_mode = #tpu.pipeline_mode<synchronous>, transform_indices = @transform_3, window_bounds = array<i64: 32, 32>}, {pipeline_mode = #tpu.pipeline_mode<synchronous>, transform_indices = @transform_4, window_bounds = array<i64: 1, 32>}, {pipeline_mode = #tpu.pipeline_mode<synchronous>, transform_indices = @transform_5, window_bounds = array<i64: 32, 128>}, {pipeline_mode = #tpu.pipeline_mode<synchronous>, transform_indices = @transform_6, window_bounds = array<i64: 1, 128>}, {transform_indices = @transform_7, window_bounds = array<i64: 1, 2, 128>}]} {
    %c0 = arith.constant 0 : index
    %c0_0 = arith.constant 0 : index
    %0 = vector.load %arg2[%c0, %c0_0] : memref<32x4xf32, #tpu.memory_space<vmem>>, vector<32x4xf32>
    %c0_1 = arith.constant 0 : index
    %c0_2 = arith.constant 0 : index
    %1 = vector.load %arg3[%c0_1, %c0_2] : memref<32x1xf32, #tpu.memory_space<vmem>>, vector<32x1xf32>
    %c0_3 = arith.constant 0 : index
    %c0_4 = arith.constant 0 : index
    %2 = vector.load %arg4[%c0_3, %c0_4] : memref<32x32xf32, #tpu.memory_space<vmem>>, vector<32x32xf32>
    %c0_5 = arith.constant 0 : index
    %c0_6 = arith.constant 0 : index
    %3 = vector.load %arg5[%c0_5, %c0_6] : memref<1x32xf32, #tpu.memory_space<vmem>>, vector<1x32xf32>
    %c0_7 = arith.constant 0 : index
    %c0_8 = arith.constant 0 : index
    %4 = vector.load %arg6[%c0_7, %c0_8] : memref<32x128xf32, #tpu.memory_space<vmem>>, vector<32x128xf32>
    %c0_9 = arith.constant 0 : index
    %c0_10 = arith.constant 0 : index
    %5 = vector.load %arg7[%c0_9, %c0_10] : memref<1x128xf32, #tpu.memory_space<vmem>>, vector<1x128xf32>
    %cst = arith.constant 3.906250e-03 : f32
    %6 = vector.broadcast %cst : f32 to vector<1x256xf32>
    %c0_11 = arith.constant 0 : index
    %c0_12 = arith.constant 0 : index
    %c0_13 = arith.constant 0 : index
    %7 = vector.load %arg1[%c0_11, %c0_12, %c0_13] : memref<2x4x256xf32, #tpu.memory_space<vmem>>, vector<1x4x256xf32>
    %8 = vector.shape_cast %7 : vector<1x4x256xf32> to vector<4x256xf32>
    %cst_14 = arith.constant dense<0.000000e+00> : vector<32x256xf32>
    %9 = tpu.matmul %0, %8, %cst_14 {dimension_numbers = #tpu.dot_dimension_numbers<[1], [0], [0], [1], [0, 0, 1, 1], [], []>} : vector<32x4xf32>, vector<4x256xf32>, vector<32x256xf32> -> vector<32x256xf32>
    %10 = vector.broadcast %1 : vector<32x1xf32> to vector<32x256xf32>
    %11 = arith.addf %9, %10 : vector<32x256xf32>
    %cst_15 = arith.constant 0.000000e+00 : f32
    %12 = vector.broadcast %cst_15 : f32 to vector<32x256xf32>
    %13 = arith.maximumf %11, %12 : vector<32x256xf32>
    %cst_16 = arith.constant dense<0.000000e+00> : vector<1x32xf32>
    %14 = tpu.matmul %6, %13, %cst_16 {dimension_numbers = #tpu.dot_dimension_numbers<[1], [1], [0], [0], [0, 0, 1, 0], [], []>} : vector<1x256xf32>, vector<32x256xf32>, vector<1x32xf32> -> vector<1x32xf32>
    %cst_17 = arith.constant dense<0.000000e+00> : vector<1x32xf32>
    %15 = tpu.matmul %14, %2, %cst_17 {dimension_numbers = #tpu.dot_dimension_numbers<[1], [0], [0], [1], [0, 0, 1, 1], [], []>} : vector<1x32xf32>, vector<32x32xf32>, vector<1x32xf32> -> vector<1x32xf32>
    %16 = arith.addf %15, %3 : vector<1x32xf32>
    %cst_18 = arith.constant 0.000000e+00 : f32
    %17 = vector.broadcast %cst_18 : f32 to vector<1x32xf32>
    %18 = arith.maximumf %16, %17 : vector<1x32xf32>
    %cst_19 = arith.constant dense<0.000000e+00> : vector<1x128xf32>
    %19 = tpu.matmul %18, %4, %cst_19 {dimension_numbers = #tpu.dot_dimension_numbers<[1], [0], [0], [1], [0, 0, 1, 1], [], []>} : vector<1x32xf32>, vector<32x128xf32>, vector<1x128xf32> -> vector<1x128xf32>
    %20 = arith.addf %19, %5 : vector<1x128xf32>
    %21 = arith.mulf %20, %20 : vector<1x128xf32>
    %cst_20 = arith.constant dense<0.000000e+00> : vector<1xf32>
    %22 = vector.multi_reduction <add>, %21, %cst_20 [1] : vector<1x128xf32> to vector<1xf32>
    %23 = vector.shape_cast %22 : vector<1xf32> to vector<1x1xf32>
    %cst_21 = arith.constant 1.000000e-24 : f32
    %24 = vector.broadcast %cst_21 : f32 to vector<1x1xf32>
    %25 = arith.maximumf %23, %24 : vector<1x1xf32>
    %26 = math.rsqrt %25 : vector<1x1xf32>
    %27 = vector.broadcast %26 : vector<1x1xf32> to vector<1x128xf32>
    %28 = arith.mulf %20, %27 : vector<1x128xf32>
    %c0_22 = arith.constant 0 : index
    %c0_23 = arith.constant 0 : index
    %c0_24 = arith.constant 0 : index
    %29 = vector.load %arg8[%c0_22, %c0_23, %c0_24] : memref<1x2x128xf32, #tpu.memory_space<vmem>>, vector<1x1x128xf32>
    %30 = vector.shape_cast %29 : vector<1x1x128xf32> to vector<1x128xf32>
    %31 = vector.shape_cast %28 : vector<1x128xf32> to vector<1x1x128xf32>
    tpu.vector_store %arg8[%c0_22, %c0_23, %c0_24], %31 {strides = array<i32>} : memref<1x2x128xf32, #tpu.memory_space<vmem>>, vector<1x1x128xf32>,
    %c1 = arith.constant 1 : index
    %c0_25 = arith.constant 0 : index
    %c0_26 = arith.constant 0 : index
    %32 = vector.load %arg1[%c1, %c0_25, %c0_26] : memref<2x4x256xf32, #tpu.memory_space<vmem>>, vector<1x4x256xf32>
    %33 = vector.shape_cast %32 : vector<1x4x256xf32> to vector<4x256xf32>
    %cst_27 = arith.constant dense<0.000000e+00> : vector<32x256xf32>
    %34 = tpu.matmul %0, %33, %cst_27 {dimension_numbers = #tpu.dot_dimension_numbers<[1], [0], [0], [1], [0, 0, 1, 1], [], []>} : vector<32x4xf32>, vector<4x256xf32>, vector<32x256xf32> -> vector<32x256xf32>
    %35 = vector.broadcast %1 : vector<32x1xf32> to vector<32x256xf32>
    %36 = arith.addf %34, %35 : vector<32x256xf32>
    %cst_28 = arith.constant 0.000000e+00 : f32
    %37 = vector.broadcast %cst_28 : f32 to vector<32x256xf32>
    %38 = arith.maximumf %36, %37 : vector<32x256xf32>
    %cst_29 = arith.constant dense<0.000000e+00> : vector<1x32xf32>
    %39 = tpu.matmul %6, %38, %cst_29 {dimension_numbers = #tpu.dot_dimension_numbers<[1], [1], [0], [0], [0, 0, 1, 0], [], []>} : vector<1x256xf32>, vector<32x256xf32>, vector<1x32xf32> -> vector<1x32xf32>
    %cst_30 = arith.constant dense<0.000000e+00> : vector<1x32xf32>
    %40 = tpu.matmul %39, %2, %cst_30 {dimension_numbers = #tpu.dot_dimension_numbers<[1], [0], [0], [1], [0, 0, 1, 1], [], []>} : vector<1x32xf32>, vector<32x32xf32>, vector<1x32xf32> -> vector<1x32xf32>
    %41 = arith.addf %40, %3 : vector<1x32xf32>
    %cst_31 = arith.constant 0.000000e+00 : f32
    %42 = vector.broadcast %cst_31 : f32 to vector<1x32xf32>
    %43 = arith.maximumf %41, %42 : vector<1x32xf32>
    %cst_32 = arith.constant dense<0.000000e+00> : vector<1x128xf32>
    %44 = tpu.matmul %43, %4, %cst_32 {dimension_numbers = #tpu.dot_dimension_numbers<[1], [0], [0], [1], [0, 0, 1, 1], [], []>} : vector<1x32xf32>, vector<32x128xf32>, vector<1x128xf32> -> vector<1x128xf32>
    %45 = arith.addf %44, %5 : vector<1x128xf32>
    %46 = arith.mulf %45, %45 : vector<1x128xf32>
    %cst_33 = arith.constant dense<0.000000e+00> : vector<1xf32>
    %47 = vector.multi_reduction <add>, %46, %cst_33 [1] : vector<1x128xf32> to vector<1xf32>
    %48 = vector.shape_cast %47 : vector<1xf32> to vector<1x1xf32>
    %cst_34 = arith.constant 1.000000e-24 : f32
    %49 = vector.broadcast %cst_34 : f32 to vector<1x1xf32>
    %50 = arith.maximumf %48, %49 : vector<1x1xf32>
    %51 = math.rsqrt %50 : vector<1x1xf32>
    %52 = vector.broadcast %51 : vector<1x1xf32> to vector<1x128xf32>
    %53 = arith.mulf %45, %52 : vector<1x128xf32>
    %c0_35 = arith.constant 0 : index
    %c1_36 = arith.constant 1 : index
    %c0_37 = arith.constant 0 : index
    %54 = vector.load %arg8[%c0_35, %c1_36, %c0_37] : memref<1x2x128xf32, #tpu.memory_space<vmem>>, vector<1x1x128xf32>
    %55 = vector.shape_cast %54 : vector<1x1x128xf32> to vector<1x128xf32>
    %56 = vector.shape_cast %53 : vector<1x128xf32> to vector<1x1x128xf32>
    tpu.vector_store %arg8[%c0_35, %c1_36, %c0_37], %56 {strides = array<i32>} : memref<1x2x128xf32, #tpu.memory_space<vmem>>, vector<1x1x128xf32>,
    return
  }
  func.func @transform_0(%arg0: i32) -> (i32, i32, i32) {
    %c0_i32 = arith.constant 0 : i32
    %c0_i32_0 = arith.constant 0 : i32
    %c0_i32_1 = arith.constant 0 : i32
    return %arg0, %c0_i32, %c0_i32_0 : i32, i32, i32
  }
  func.func @transform_1(%arg0: i32) -> (i32, i32) {
    %c0_i32 = arith.constant 0 : i32
    %c0_i32_0 = arith.constant 0 : i32
    %c0_i32_1 = arith.constant 0 : i32
    return %c0_i32, %c0_i32_0 : i32, i32
  }
  func.func @transform_2(%arg0: i32) -> (i32, i32) {
    %c0_i32 = arith.constant 0 : i32
    %c0_i32_0 = arith.constant 0 : i32
    %c0_i32_1 = arith.constant 0 : i32
    return %c0_i32, %c0_i32_0 : i32, i32
  }
  func.func @transform_3(%arg0: i32) -> (i32, i32) {
    %c0_i32 = arith.constant 0 : i32
    %c0_i32_0 = arith.constant 0 : i32
    %c0_i32_1 = arith.constant 0 : i32
    return %c0_i32, %c0_i32_0 : i32, i32
  }
  func.func @transform_4(%arg0: i32) -> (i32, i32) {
    %c0_i32 = arith.constant 0 : i32
    %c0_i32_0 = arith.constant 0 : i32
    %c0_i32_1 = arith.constant 0 : i32
    return %c0_i32, %c0_i32_0 : i32, i32
  }
  func.func @transform_5(%arg0: i32) -> (i32, i32) {
    %c0_i32 = arith.constant 0 : i32
    %c0_i32_0 = arith.constant 0 : i32
    %c0_i32_1 = arith.constant 0 : i32
    return %c0_i32, %c0_i32_0 : i32, i32
  }
  func.func @transform_6(%arg0: i32) -> (i32, i32) {
    %c0_i32 = arith.constant 0 : i32
    %c0_i32_0 = arith.constant 0 : i32
    %c0_i32_1 = arith.constant 0 : i32
    return %c0_i32, %c0_i32_0 : i32, i32
  }
  func.func @transform_7(%arg0: i32) -> (i32, i32, i32) {
    %c0_i32 = arith.constant 0 : i32
    %c0_i32_0 = arith.constant 0 : i32
    %c0_i32_1 = arith.constant 0 : i32
    return %arg0, %c0_i32, %c0_i32_0 : i32, i32, i32
  }
}

</mosaic_0001>

<llo_original>
// kernel: supcon_forward.1
$region0: #{supcon_forward.1}
  #allocation0 [shape = 'u32[]', space=smem, size = 0x4, offset = 0x4, fixed_abs, tag = 'smem constant byte address 0x4 - core index']
  #allocation1 [shape = 'u32[72,128]{1,0:T(1,128)}', space=vmem, size = 0x9000, scoped, tag = 'internal scratch']
  %s0 = inlined_call_operand.vmem [shape: f32[4,4,256], index: 0, kind: input, shape index: {}]
  %s1 = inlined_call_operand.vmem [shape: f32[32,4], index: 1, kind: input, shape index: {}]
  %s2 = inlined_call_operand.vmem [shape: f32[32,1], index: 2, kind: input, shape index: {}]
  %s3 = inlined_call_operand.vmem [shape: f32[32,32], index: 3, kind: input, shape index: {}]
  %s4 = inlined_call_operand.vmem [shape: f32[1,32], index: 4, kind: input, shape index: {}]
  %s5 = inlined_call_operand.vmem [shape: f32[32,128], index: 5, kind: input, shape index: {}]
  %s6 = inlined_call_operand.vmem [shape: f32[1,128], index: 6, kind: input, shape index: {}]
  %s7 = inlined_call_operand.hbm [shape: f32[2,2,128], index: 7, kind: output, shape index: {}]
  %s8 = sld [smem:[#allocation0]]
  $region61: #{supcon_forward.1} parent=0
    _
  %s10 = ssub.s32 1, %s8
  %s11 = scalar_select 0, %s10, %s8
  $region1: #{supcon_forward.1} parent=0
    #allocation2 [shape = 'u8[2048]{0}', space=vmem, size = 0x800, scoped, tag = 'output window, operand 0']
    #allocation3 [shape = 's32[2]{0}', space=sflag, size = 0x8, scoped, tag = 'scoped memory for supcon_forward.1']
    %12 = vsyncpa [#allocation3], 0
    %s13 = scalar_lea.sflag [#allocation3], 1
    %14 = vsyncpa %s13, 0
    loop: start=0, step=1, limit=4
    $region2: #{supcon_forward.1} parent=1 // loop_pre_header
      _
    $region3: #{supcon_forward.1} parent=1 // loop_header
      %s16 = sphi 0, %s20
      %p17 = scmp.ge.s32.totalorder %s16, 4
      %s26 = sphi 0, %s28
      %s29 = sphi 0, %s26
      %s30 = sphi 0, %s29
      %s46 = sphi 0, %s30
      %s50 = sphi 0, %s50
      %s52 = sphi 0, %s50
      %s53 = sphi 0, %s52
      %s67 = sphi 0, %s53
      %s71 = sphi 0, %s71
      %s73 = sphi 0, %s71
      %s74 = sphi 0, %s73
      %s88 = sphi 0, %s74
      %s92 = sphi 0, %s92
      %s94 = sphi 0, %s92
      %s95 = sphi 0, %s94
      %s109 = sphi 0, %s95
      %s113 = sphi 0, %s113
      %s115 = sphi 0, %s113
      %s116 = sphi 0, %s115
      %s130 = sphi 0, %s116
      %s134 = sphi 0, %s134
      %s136 = sphi 0, %s134
      %s137 = sphi 0, %s136
      %s151 = sphi 0, %s137
      %s155 = sphi 0, %s155
      %s157 = sphi 0, %s155
      %s158 = sphi 0, %s157
      %s172 = sphi 0, %s158
      %s178 = sphi 0, %s180
      %s181 = sphi 0, %s178
      %s182 = sphi 0, %s181
      %s198 = sphi 0, %s182
    $region4: #{supcon_forward.1} parent=1 // loop_header_branch
      %19 = sbr.rel (%p17) target = $region8
    $region5: #{supcon_forward.1} parent=1 // loop_body
      %s21 = ssub.s32 %s16, 1
      %s22 = ssub.s32 %s16, 2
      %s23 = sadd.s32 %s16, 1
      %s24 = ssub.s32 %s16, %s23
      %p25 = scmp.eq.s32.totalorder %s24, 0
      %s27 = sadd.s32 %s26, 1
      %s28 = scalar_select %p25, %s26, %s27
      %p31 = pneg %p25
      %p32 = scmp.eq.s32.totalorder %s16, 1
      %p33 = por %p31, %p32
      %p34 = scmp.ne.s32.totalorder %s26, %s29
      %p35 = scmp.eq.s32.totalorder %s16, 0
      %p36 = por %p34, %p35
      %p37 = scmp.ne.s32.totalorder %s26, %s29
      %p38 = scmp.eq.s32.totalorder %s21, 1
      %p39 = por %p37, %p38
      %p40 = scmp.ne.s32.totalorder %s29, %s30
      %p41 = scmp.eq.s32.totalorder %s21, 0
      %p42 = por %p40, %p41
      %p43 = scmp.ne.s32.totalorder %s29, %s30
      %p44 = scmp.eq.s32.totalorder %s22, 1
      %p45 = por %p43, %p44
      %p47 = scmp.ne.s32.totalorder %s30, %s46
      %p48 = scmp.eq.s32.totalorder %s22, 0
      %p49 = por %p47, %p48
      %s51 = sadd.s32 %s50, 1
      %p54 = scmp.eq.s32.totalorder %s16, 1
      %p55 = scmp.ne.s32.totalorder %s50, %s52
      %p56 = scmp.eq.s32.totalorder %s16, 0
      %p57 = por %p55, %p56
      %p58 = scmp.ne.s32.totalorder %s50, %s52
      %p59 = scmp.eq.s32.totalorder %s21, 1
      %p60 = por %p58, %p59
      %p61 = scmp.ne.s32.totalorder %s52, %s53
      %p62 = scmp.eq.s32.totalorder %s21, 0
      %p63 = por %p61, %p62
      %p64 = scmp.ne.s32.totalorder %s52, %s53
      %p65 = scmp.eq.s32.totalorder %s22, 1
      %p66 = por %p64, %p65
      %p68 = scmp.ne.s32.totalorder %s53, %s67
      %p69 = scmp.eq.s32.totalorder %s22, 0
      %p70 = por %p68, %p69
      %s72 = sadd.s32 %s71, 1
      %p75 = scmp.eq.s32.totalorder %s16, 1
      %p76 = scmp.ne.s32.totalorder %s71, %s73
      %p77 = scmp.eq.s32.totalorder %s16, 0
      %p78 = por %p76, %p77
      %p79 = scmp.ne.s32.totalorder %s71, %s73
      %p80 = scmp.eq.s32.totalorder %s21, 1
      %p81 = por %p79, %p80
      %p82 = scmp.ne.s32.totalorder %s73, %s74
      %p83 = scmp.eq.s32.totalorder %s21, 0
      %p84 = por %p82, %p83
      %p85 = scmp.ne.s32.totalorder %s73, %s74
      %p86 = scmp.eq.s32.totalorder %s22, 1
      %p87 = por %p85, %p86
      %p89 = scmp.ne.s32.totalorder %s74, %s88
      %p90 = scmp.eq.s32.totalorder %s22, 0
      %p91 = por %p89, %p90
      %s93 = sadd.s32 %s92, 1
      %p96 = scmp.eq.s32.totalorder %s16, 1
      %p97 = scmp.ne.s32.totalorder %s92, %s94
      %p98 = scmp.eq.s32.totalorder %s16, 0
      %p99 = por %p97, %p98
      %p100 = scmp.ne.s32.totalorder %s92, %s94
      %p101 = scmp.eq.s32.totalorder %s21, 1
      %p102 = por %p100, %p101
      %p103 = scmp.ne.s32.totalorder %s94, %s95
      %p104 = scmp.eq.s32.totalorder %s21, 0
      %p105 = por %p103, %p104
      %p106 = scmp.ne.s32.totalorder %s94, %s95
      %p107 = scmp.eq.s32.totalorder %s22, 1
      %p108 = por %p106, %p107
      %p110 = scmp.ne.s32.totalorder %s95, %s109
      %p111 = scmp.eq.s32.totalorder %s22, 0
      %p112 = por %p110, %p111
      %s114 = sadd.s32 %s113, 1
      %p117 = scmp.eq.s32.totalorder %s16, 1
      %p118 = scmp.ne.s32.totalorder %s113, %s115
      %p119 = scmp.eq.s32.totalorder %s16, 0
      %p120 = por %p118, %p119
      %p121 = scmp.ne.s32.totalorder %s113, %s115
      %p122 = scmp.eq.s32.totalorder %s21, 1
      %p123 = por %p121, %p122
      %p124 = scmp.ne.s32.totalorder %s115, %s116
      %p125 = scmp.eq.s32.totalorder %s21, 0
      %p126 = por %p124, %p125
      %p127 = scmp.ne.s32.totalorder %s115, %s116
      %p128 = scmp.eq.s32.totalorder %s22, 1
      %p129 = por %p127, %p128
      %p131 = scmp.ne.s32.totalorder %s116, %s130
      %p132 = scmp.eq.s32.totalorder %s22, 0
      %p133 = por %p131, %p132
      %s135 = sadd.s32 %s134, 1
      %p138 = scmp.eq.s32.totalorder %s16, 1
      %p139 = scmp.ne.s32.totalorder %s134, %s136
      %p140 = scmp.eq.s32.totalorder %s16, 0
      %p141 = por %p139, %p140
      %p142 = scmp.ne.s32.totalorder %s134, %s136
      %p143 = scmp.eq.s32.totalorder %s21, 1
      %p144 = por %p142, %p143
      %p145 = scmp.ne.s32.totalorder %s136, %s137
      %p146 = scmp.eq.s32.totalorder %s21, 0
      %p147 = por %p145, %p146
      %p148 = scmp.ne.s32.totalorder %s136, %s137
      %p149 = scmp.eq.s32.totalorder %s22, 1
      %p150 = por %p148, %p149
      %p152 = scmp.ne.s32.totalorder %s137, %s151
      %p153 = scmp.eq.s32.totalorder %s22, 0
      %p154 = por %p152, %p153
      %s156 = sadd.s32 %s155, 1
      %p159 = scmp.eq.s32.totalorder %s16, 1
      %p160 = scmp.ne.s32.totalorder %s155, %s157
      %p161 = scmp.eq.s32.totalorder %s16, 0
      %p162 = por %p160, %p161
      %p163 = scmp.ne.s32.totalorder %s155, %s157
      %p164 = scmp.eq.s32.totalorder %s21, 1
      %p165 = por %p163, %p164
      %p166 = scmp.ne.s32.totalorder %s157, %s158
      %p167 = scmp.eq.s32.totalorder %s21, 0
      %p168 = por %p166, %p167
      %p169 = scmp.ne.s32.totalorder %s157, %s158
      %p170 = scmp.eq.s32.totalorder %s22, 1
      %p171 = por %p169, %p170
      %p173 = scmp.ne.s32.totalorder %s158, %s172
      %p174 = scmp.eq.s32.totalorder %s22, 0
      %p175 = por %p173, %p174
      %s176 = ssub.s32 %s16, %s23
      %p177 = scmp.eq.s32.totalorder %s176, 0
      %s179 = sadd.s32 %s178, 1
      %s180 = scalar_select %p177, %s178, %s179
      %p183 = pneg %p177
      %p184 = scmp.eq.s32.totalorder %s16, 1
      %p185 = por %p183, %p184
      %p186 = scmp.ne.s32.totalorder %s178, %s181
      %p187 = scmp.eq.s32.totalorder %s16, 0
      %p188 = por %p186, %p187
      %p189 = scmp.ne.s32.totalorder %s178, %s181
      %p190 = scmp.eq.s32.totalorder %s21, 1
      %p191 = por %p189, %p190
      %p192 = scmp.ne.s32.totalorder %s181, %s182
      %p193 = scmp.eq.s32.totalorder %s21, 0
      %p194 = por %p192, %p193
      %p195 = scmp.ne.s32.totalorder %s181, %s182
      %p196 = scmp.eq.s32.totalorder %s22, 1
      %p197 = por %p195, %p196
      %p199 = scmp.ne.s32.totalorder %s182, %s198
      %p200 = scmp.eq.s32.totalorder %s22, 0
      %p201 = por %p199, %p200
      %p202 = scmp.le.s32.totalorder 1, %s16
      %p203 = scmp.lt.s32.totalorder %s16, 3
      %p204 = pnand %p202, %p203
      %p205 = pneg %p204
      // Predicated region
      $region9: #{supcon_forward.1} parent=5 // pred_check
        _
      $region10: #{supcon_forward.1} parent=5 // pred_check_branch
        %207 = sbr.rel (%p204) target = $region12
      $region11: #{supcon_forward.1} parent=5 // pred_region
        %s208 = ssub.s32 %s16, 1
        // Predicated region
        $region13: #{supcon_forward.1} parent=11 // pred_check
          %p209 = pneg %p63
        $region14: #{supcon_forward.1} parent=11 // pred_check_branch
          %211 = sbr.rel (%p209) target = $region16
        $region15: #{supcon_forward.1} parent=11 // pred_region
          _
        $region16: #{supcon_forward.1} parent=11 // pred_fallthru
          _
        // Predicated region
        $region17: #{supcon_forward.1} parent=11 // pred_check
          %p212 = pneg %p84
        $region18: #{supcon_forward.1} parent=11 // pred_check_branch
          %214 = sbr.rel (%p212) target = $region20
        $region19: #{supcon_forward.1} parent=11 // pred_region
          _
        $region20: #{supcon_forward.1} parent=11 // pred_fallthru
          _
        // Predicated region
        $region21: #{supcon_forward.1} parent=11 // pred_check
          %p215 = pneg %p105
        $region22: #{supcon_forward.1} parent=11 // pred_check_branch
          %217 = sbr.rel (%p215) target = $region24
        $region23: #{supcon_forward.1} parent=11 // pred_region
          _
        $region24: #{supcon_forward.1} parent=11 // pred_fallthru
          _
        // Predicated region
        $region25: #{supcon_forward.1} parent=11 // pred_check
          %p218 = pneg %p126
        $region26: #{supcon_forward.1} parent=11 // pred_check_branch
          %220 = sbr.rel (%p218) target = $region28
        $region27: #{supcon_forward.1} parent=11 // pred_region
          _
        $region28: #{supcon_forward.1} parent=11 // pred_fallthru
          _
        // Predicated region
        $region29: #{supcon_forward.1} parent=11 // pred_check
          %p221 = pneg %p147
        $region30: #{supcon_forward.1} parent=11 // pred_check_branch
          %223 = sbr.rel (%p221) target = $region32
        $region31: #{supcon_forward.1} parent=11 // pred_region
          _
        $region32: #{supcon_forward.1} parent=11 // pred_fallthru
          _
        // Predicated region
        $region33: #{supcon_forward.1} parent=11 // pred_check
          %p224 = pneg %p168
        $region34: #{supcon_forward.1} parent=11 // pred_check_branch
          %226 = sbr.rel (%p224) target = $region36
        $region35: #{supcon_forward.1} parent=11 // pred_region
          _
        $region36: #{supcon_forward.1} parent=11 // pred_fallthru
          _
      $region12: #{supcon_forward.1} parent=5 // pred_fallthru
        _
      %p227 = scmp.lt.s32.totalorder %s16, 2
      // Predicated region
      $region37: #{supcon_forward.1} parent=5 // pred_check
        %p228 = pneg %p227
      $region38: #{supcon_forward.1} parent=5 // pred_check_branch
        %230 = sbr.rel (%p228) target = $region40
      $region39: #{supcon_forward.1} parent=5 // pred_region
        // Predicated region
        $region41: #{supcon_forward.1} parent=39 // pred_check
          %p231 = pneg %p36
        $region42: #{supcon_forward.1} parent=39 // pred_check_branch
          %233 = sbr.rel (%p231) target = $region44
        $region43: #{supcon_forward.1} parent=39 // pred_region
          %s234 = smul.u32 2, %s16
          %p235 = scmp.lt.s32.totalorder %s234, 3
          %s236 = scalar_select %p235, %s234, 3
          %s237 = smul.addr %s236, 2
          %s238 = smul.addr %s237, 4
          %s239 = scalar_lea.vmem %s0, %s238
          %s240 = smul.u32 2, %s16
        $region44: #{supcon_forward.1} parent=39 // pred_fallthru
          _
      $region40: #{supcon_forward.1} parent=5 // pred_fallthru
        _
      %p241 = scmp.le.s32.totalorder 1, %s16
      %p242 = scmp.lt.s32.totalorder %s16, 3
      %p243 = pnand %p241, %p242
      %p244 = pneg %p243
      // Predicated region
      $region45: #{supcon_forward.1} parent=5 // pred_check
        _
      $region46: #{supcon_forward.1} parent=5 // pred_check_branch
        %246 = sbr.rel (%p243) target = $region48
      $region47: #{supcon_forward.1} parent=5 // pred_region
        %s247 = ssub.s32 %s16, 1
        %s248 = smul.u32 2, %s21
        %p249 = scmp.lt.s32.totalorder %s248, 3
        %s250 = scalar_select %p249, %s248, 3
        %s251 = smul.addr %s250, 2
        %s252 = smul.addr %s251, 4
        %s253 = scalar_lea.vmem %s0, %s252
        %p254 = pneg %p42
        %p255 = pneg %p39
        %p256 = pneg %p63
        %p257 = pneg %p60
        %p258 = pneg %p84
        %p259 = pneg %p81
        %p260 = pneg %p105
        %p261 = pneg %p102
        %p262 = pneg %p126
        %p263 = pneg %p123
        %p264 = pneg %p147
        %p265 = pneg %p144
        %p266 = pneg %p168
        %p267 = pneg %p165
        %p268 = pneg %p194
        %p269 = pneg %p191
        %s270 = sand.u32 %s181, 1
        %s271 = scalar_lea.sflag [#allocation3], %s270
        %s272 = sand.u32 %s181, 1
        %s273 = smul.addr %s272, 2
        %s274 = scalar_lea.vmem [#allocation2], %s273
        %s275 = smul.u32 2, %s21
        %p276 = scmp.lt.s32.totalorder %s275, 3
        %s277 = scalar_select %p276, %s275, 3
        %s278 = smul.addr %s277, 2
        %s279 = smul.addr %s278, 4
        %s280 = scalar_lea.vmem %s0, %s279
        %s281 = smul.u32 2, %s21
        %v282 = vld [vmem:[%s1] sm:$0xff]
        %v283 = vld [vmem:[%s1 + $0x8] sm:$0xff]
        %v284 = vld [vmem:[%s1 + $0x10] sm:$0xff]
        %v285 = vld [vmem:[%s1 + $0x18] sm:$0xff]
        %v286 = vld [vmem:[%s2] sm:$0xff]
        %v287 = vld [vmem:[%s2 + $0x8] sm:$0xff]
        %v288 = vld [vmem:[%s2 + $0x10] sm:$0xff]
        %v289 = vld [vmem:[%s2 + $0x18] sm:$0xff]
        %v290 = vld [vmem:[%s3] sm:$0xff]
        %v291 = vld [vmem:[%s3 + $0x8] sm:$0xff]
        %v292 = vld [vmem:[%s3 + $0x10] sm:$0xff]
        %v293 = vld [vmem:[%s3 + $0x18] sm:$0xff]
        %v294 = vld [vmem:[%s4] sm:$0x1]
        %v295 = vld [vmem:[%s5] sm:$0xff]
        %v296 = vld [vmem:[%s5 + $0x8] sm:$0xff]
        %v297 = vld [vmem:[%s5 + $0x10] sm:$0xff]
        %v298 = vld [vmem:[%s5 + $0x18] sm:$0xff]
        %v299 = vld [vmem:[%s6] sm:$0x1]
        %v300 = vld [vmem:[%s280] sm:$0xff]
        %302 = vset.pattern.permute.xlu0 0
        %303 = vperm.xlu0 %302, %v286
        %v304 = vpop.permute.xlu0 %303
        %307 = vset.pattern.permute.xlu0 0
        %308 = vperm.xlu0 %307, %v287
        %v309 = vpop.permute.xlu0 %308
        %312 = vset.pattern.permute.xlu0 0
        %313 = vperm.xlu0 %312, %v288
        %v314 = vpop.permute.xlu0 %313
        %317 = vset.pattern.permute.xlu0 0
        %318 = vperm.xlu0 %317, %v289
        %v319 = vpop.permute.xlu0 %318
        %322 = vst [vmem:[#allocation1] ss:$2 sm:$0xff] %v300
        %v323 = vld.sshfl [vmem:[#allocation1] sm:$0xff pattern:$0x75316420]
        %v324 = vld.sshfl [vmem:[#allocation1 + $0x8] sm:$0xff pattern:$0x75316420]
        %vm325 = vcmask 31744
        %v327 = vsel %vm325, %v282, 0
        %v330 = vsel %vm325, %v283, 0
        %v333 = vsel %vm325, %v284, 0
        %v336 = vsel %vm325, %v285, 0
        %vm338 = vcmask 1043456
        %v339 = vsel %vm338, %v323, 0
        %v341 = vsel %vm338, %v324, 0
        %343 = vmatpush.msra.mxu0 0.0
        %344 = vmatpush.msra.mxu0 0.0
        %345 = vmatpush.msra.mxu0 0.0
        %346 = vmatpush.msra.mxu0 0.0
        %347 = vmatpush.msra.mxu0 0.0
        %348 = vmatpush.msra.mxu0 0.0
        %349 = vmatpush.msra.mxu0 0.0
        %350 = vmatpush.msra.mxu0 0.0
        %351 = vmatpush.msra.mxu0 0.0
        %352 = vmatpush.msra.mxu0 0.0
        %353 = vmatpush.msra.mxu0 0.0
        %354 = vmatpush.msra.mxu0 0.0
        %355 = vmatpush.msra.mxu0 0.0
        %356 = vmatpush.msra.mxu0 0.0
        %357 = vmatpush.msra.mxu0 0.0
        %358 = vmatpush.msra.mxu0 %v339
        %359 = vmatmul.f32.gmra.mxu0 %v327
        %v360 = vpop.f32.mrf.mxu0
        %v361 = vadd.f32 %v304, %v360
        %362 = vmatmul.f32.gmra.mxu0 %v330
        %v363 = vpop.f32.mrf.mxu0
        %v364 = vadd.f32 %v309, %v363
        %365 = vmatmul.f32.gmra.mxu0 %v333
        %v366 = vpop.f32.mrf.mxu0
        %v367 = vadd.f32 %v314, %v366
        %368 = vmatmul.f32.gmra.mxu0 %v336
        %v369 = vpop.f32.mrf.mxu0
        %v370 = vadd.f32 %v319, %v369
        %371 = vdwg.mxu0
        %372 = vmatpush.msra.mxu0 0.0
        %373 = vmatpush.msra.mxu0 0.0
        %374 = vmatpush.msra.mxu0 0.0
        %375 = vmatpush.msra.mxu0 0.0
        %376 = vmatpush.msra.mxu0 0.0
        %377 = vmatpush.msra.mxu0 0.0
        %378 = vmatpush.msra.mxu0 0.0
        %379 = vmatpush.msra.mxu0 0.0
        %380 = vmatpush.msra.mxu0 0.0
        %381 = vmatpush.msra.mxu0 0.0
        %382 = vmatpush.msra.mxu0 0.0
        %383 = vmatpush.msra.mxu0 0.0
        %384 = vmatpush.msra.mxu0 0.0
        %385 = vmatpush.msra.mxu0 0.0
        %386 = vmatpush.msra.mxu0 0.0
        %387 = vmatpush.msra.mxu0 %v341
        %388 = vmatmul.f32.gmra.mxu0 %v327
        %v389 = vpop.f32.mrf.mxu0
        %v390 = vadd.f32 %v304, %v389
        %391 = vmatmul.f32.gmra.mxu0 %v330
        %v392 = vpop.f32.mrf.mxu0
        %v393 = vadd.f32 %v309, %v392
        %394 = vmatmul.f32.gmra.mxu0 %v333
        %v395 = vpop.f32.mrf.mxu0
        %v396 = vadd.f32 %v314, %v395
        %397 = vmatmul.f32.gmra.mxu0 %v336
        %v398 = vpop.f32.mrf.mxu0
        %v399 = vadd.f32 %v319, %v398
        %400 = vdwg.mxu0
        %v401 = vmax.f32 %v361, 0.0
        %v402 = vmax.f32 %v390, 0.0
        %v403 = vmax.f32 %v364, 0.0
        %v404 = vmax.f32 %v393, 0.0
        %v405 = vmax.f32 %v367, 0.0
        %v406 = vmax.f32 %v396, 0.0
        %v407 = vmax.f32 %v370, 0.0
        %v408 = vmax.f32 %v399, 0.0
        %409 = vmatpush.xpose.msra.mxu0 0.0
        %410 = vmatpush.xpose.msra.mxu0 0.0
        %411 = vmatpush.xpose.msra.mxu0 0.0
        %412 = vmatpush.xpose.msra.mxu0 0.0
        %413 = vmatpush.xpose.msra.mxu0 0.0
        %414 = vmatpush.xpose.msra.mxu0 0.0
        %415 = vmatpush.xpose.msra.mxu0 0.0
        %416 = vmatpush.xpose.msra.mxu0 0.0
        %417 = vmatpush.xpose.msra.mxu0 0.0
        %418 = vmatpush.xpose.msra.mxu0 0.0
        %419 = vmatpush.xpose.msra.mxu0 0.0
        %420 = vmatpush.xpose.msra.mxu0 0.0
        %421 = vmatpush.xpose.msra.mxu0 %v407
        %422 = vmatpush.xpose.msra.mxu0 %v405
        %423 = vmatpush.xpose.msra.mxu0 %v403
        %424 = vmatpush.xpose.msra.mxu0 %v401
        %425 = vmatmul.f32.gmra.mxu0 0.00390625
        %v426 = vpop.f32.mrf.mxu0
        %v427 = vadd.f32 0.0, %v426
        %428 = vdwg.mxu0
        %429 = vmatpush.xpose.msra.mxu0 0.0
        %430 = vmatpush.xpose.msra.mxu0 0.0
        %431 = vmatpush.xpose.msra.mxu0 0.0
        %432 = vmatpush.xpose.msra.mxu0 0.0
        %433 = vmatpush.xpose.msra.mxu0 0.0
        %434 = vmatpush.xpose.msra.mxu0 0.0
        %435 = vmatpush.xpose.msra.mxu0 0.0
        %436 = vmatpush.xpose.msra.mxu0 0.0
        %437 = vmatpush.xpose.msra.mxu0 0.0
        %438 = vmatpush.xpose.msra.mxu0 0.0
        %439 = vmatpush.xpose.msra.mxu0 0.0
        %440 = vmatpush.xpose.msra.mxu0 0.0
        %441 = vmatpush.xpose.msra.mxu0 %v408
        %442 = vmatpush.xpose.msra.mxu0 %v406
        %443 = vmatpush.xpose.msra.mxu0 %v404
        %444 = vmatpush.xpose.msra.mxu0 %v402
        %445 = vmatmul.f32.gmra.mxu0 0.00390625
        %v446 = vpop.f32.mrf.mxu0
        %v447 = vadd.f32 %v427, %v446
        %448 = vdwg.mxu0
        %vm449 = vcmask 261120
        %v451 = vsel %vm449, %v447, 0
        %453 = vmatpush.msra.mxu0 0.0
        %454 = vmatpush.msra.mxu0 0.0
        %455 = vmatpush.msra.mxu0 0.0
        %456 = vmatpush.msra.mxu0 0.0
        %457 = vmatpush.msra.mxu0 0.0
        %458 = vmatpush.msra.mxu0 0.0
        %459 = vmatpush.msra.mxu0 0.0
        %460 = vmatpush.msra.mxu0 0.0
        %461 = vmatpush.msra.mxu0 0.0
        %462 = vmatpush.msra.mxu0 0.0
        %463 = vmatpush.msra.mxu0 0.0
        %464 = vmatpush.msra.mxu0 0.0
        %465 = vmatpush.msra.mxu0 %v293
        %466 = vmatpush.msra.mxu0 %v292
        %467 = vmatpush.msra.mxu0 %v291
        %468 = vmatpush.msra.mxu0 %v290
        %469 = vmatmul.f32.gmra.mxu0 %v451
        %v470 = vpop.f32.mrf.mxu0
        %v471 = vadd.f32 %v294, %v470
        %472 = vdwg.mxu0
        %v473 = vmax.f32 %v471, 0.0
        %v475 = vsel %vm449, %v473, 0
        %477 = vmatpush.msra.mxu0 0.0
        %478 = vmatpush.msra.mxu0 0.0
        %479 = vmatpush.msra.mxu0 0.0
        %480 = vmatpush.msra.mxu0 0.0
        %481 = vmatpush.msra.mxu0 0.0
        %482 = vmatpush.msra.mxu0 0.0
        %483 = vmatpush.msra.mxu0 0.0
        %484 = vmatpush.msra.mxu0 0.0
        %485 = vmatpush.msra.mxu0 0.0
        %486 = vmatpush.msra.mxu0 0.0
        %487 = vmatpush.msra.mxu0 0.0
        %488 = vmatpush.msra.mxu0 0.0
        %489 = vmatpush.msra.mxu0 %v298
        %490 = vmatpush.msra.mxu0 %v297
        %491 = vmatpush.msra.mxu0 %v296
        %492 = vmatpush.msra.mxu0 %v295
        %493 = vmatmul.f32.gmra.mxu0 %v475
        %v494 = vpop.f32.mrf.mxu0
        %v495 = vadd.f32 %v299, %v494
        %496 = vdwg.mxu0
        %v497 = vmul.f32 %v495, %v495
        %vm498 = vcmask 1040384
        %v499 = vsel %vm498, %v497, 0.0
        %500 = vadd.xlane.f32.xlu0 %v499
        %v501 = vpop.xlane.xlu0 %500
        %v502 = vmax.f32 %v501, 1e-24
        %v503 = vrsqrt.pop %v502
        %v504 = vmul.f32 %v503, %v502
        %v505 = vmul.f32 %v504, %v503
        %v506 = vmul.f32 0.5, %v505
        %v507 = vsub.f32 1.5, %v506
        %v508 = vmul.f32 %v503, %v507
        %vm509 = vweird.f32 %v502
        %vm510 = vweird.f32 %v503
        %vm511 = vmor %vm509, %vm510
        %v512 = vsel %vm511, %v503, %v508
        %v513 = vmul.f32 %v495, %v512
        %514 = vst [vmem:[%s274] sm:$0x1] %v513
        %s515 = scalar_lea.vmem %s280, 8
        %v516 = vld [vmem:[%s515] sm:$0xff]
        %518 = vst [vmem:[#allocation1] ss:$2 sm:$0xff] %v516
        %v519 = vld.sshfl [vmem:[#allocation1] sm:$0xff pattern:$0x75316420]
        %v520 = vld.sshfl [vmem:[#allocation1 + $0x8] sm:$0xff pattern:$0x75316420]
        %v521 = vsel %vm338, %v519, 0
        %v523 = vsel %vm338, %v520, 0
        %525 = vmatpush.msra.mxu0 0.0
        %526 = vmatpush.msra.mxu0 0.0
        %527 = vmatpush.msra.mxu0 0.0
        %528 = vmatpush.msra.mxu0 0.0
        %529 = vmatpush.msra.mxu0 0.0
        %530 = vmatpush.msra.mxu0 0.0
        %531 = vmatpush.msra.mxu0 0.0
        %532 = vmatpush.msra.mxu0 0.0
        %533 = vmatpush.msra.mxu0 0.0
        %534 = vmatpush.msra.mxu0 0.0
        %535 = vmatpush.msra.mxu0 0.0
        %536 = vmatpush.msra.mxu0 0.0
        %537 = vmatpush.msra.mxu0 0.0
        %538 = vmatpush.msra.mxu0 0.0
        %539 = vmatpush.msra.mxu0 0.0
        %540 = vmatpush.msra.mxu0 %v521
        %541 = vmatmul.f32.gmra.mxu0 %v327
        %v542 = vpop.f32.mrf.mxu0
        %v543 = vadd.f32 %v304, %v542
        %544 = vmatmul.f32.gmra.mxu0 %v330
        %v545 = vpop.f32.mrf.mxu0
        %v546 = vadd.f32 %v309, %v545
        %547 = vmatmul.f32.gmra.mxu0 %v333
        %v548 = vpop.f32.mrf.mxu0
        %v549 = vadd.f32 %v314, %v548
        %550 = vmatmul.f32.gmra.mxu0 %v336
        %v551 = vpop.f32.mrf.mxu0
        %v552 = vadd.f32 %v319, %v551
        %553 = vdwg.mxu0
        %554 = vmatpush.msra.mxu0 0.0
        %555 = vmatpush.msra.mxu0 0.0
        %556 = vmatpush.msra.mxu0 0.0
        %557 = vmatpush.msra.mxu0 0.0
        %558 = vmatpush.msra.mxu0 0.0
        %559 = vmatpush.msra.mxu0 0.0
        %560 = vmatpush.msra.mxu0 0.0
        %561 = vmatpush.msra.mxu0 0.0
        %562 = vmatpush.msra.mxu0 0.0
        %563 = vmatpush.msra.mxu0 0.0
        %564 = vmatpush.msra.mxu0 0.0
        %565 = vmatpush.msra.mxu0 0.0
        %566 = vmatpush.msra.mxu0 0.0
        %567 = vmatpush.msra.mxu0 0.0
        %568 = vmatpush.msra.mxu0 0.0
        %569 = vmatpush.msra.mxu0 %v523
        %570 = vmatmul.f32.gmra.mxu0 %v327
        %v571 = vpop.f32.mrf.mxu0
        %v572 = vadd.f32 %v304, %v571
        %573 = vmatmul.f32.gmra.mxu0 %v330
        %v574 = vpop.f32.mrf.mxu0
        %v575 = vadd.f32 %v309, %v574
        %576 = vmatmul.f32.gmra.mxu0 %v333
        %v577 = vpop.f32.mrf.mxu0
        %v578 = vadd.f32 %v314, %v577
        %579 = vmatmul.f32.gmra.mxu0 %v336
        %v580 = vpop.f32.mrf.mxu0
        %v581 = vadd.f32 %v319, %v580
        %582 = vdwg.mxu0
        %v583 = vmax.f32 %v543, 0.0
        %v584 = vmax.f32 %v572, 0.0
        %v585 = vmax.f32 %v546, 0.0
        %v586 = vmax.f32 %v575, 0.0
        %v587 = vmax.f32 %v549, 0.0
        %v588 = vmax.f32 %v578, 0.0
        %v589 = vmax.f32 %v552, 0.0
        %v590 = vmax.f32 %v581, 0.0
        %591 = vmatpush.xpose.msra.mxu0 0.0
        %592 = vmatpush.xpose.msra.mxu0 0.0
        %593 = vmatpush.xpose.msra.mxu0 0.0
        %594 = vmatpush.xpose.msra.mxu0 0.0
        %595 = vmatpush.xpose.msra.mxu0 0.0
        %596 = vmatpush.xpose.msra.mxu0 0.0
        %597 = vmatpush.xpose.msra.mxu0 0.0
        %598 = vmatpush.xpose.msra.mxu0 0.0
        %599 = vmatpush.xpose.msra.mxu0 0.0
        %600 = vmatpush.xpose.msra.mxu0 0.0
        %601 = vmatpush.xpose.msra.mxu0 0.0
        %602 = vmatpush.xpose.msra.mxu0 0.0
        %603 = vmatpush.xpose.msra.mxu0 %v589
        %604 = vmatpush.xpose.msra.mxu0 %v587
        %605 = vmatpush.xpose.msra.mxu0 %v585
        %606 = vmatpush.xpose.msra.mxu0 %v583
        %607 = vmatmul.f32.gmra.mxu0 0.00390625
        %v608 = vpop.f32.mrf.mxu0
        %v609 = vadd.f32 0.0, %v608
        %610 = vdwg.mxu0
        %611 = vmatpush.xpose.msra.mxu0 0.0
        %612 = vmatpush.xpose.msra.mxu0 0.0
        %613 = vmatpush.xpose.msra.mxu0 0.0
        %614 = vmatpush.xpose.msra.mxu0 0.0
        %615 = vmatpush.xpose.msra.mxu0 0.0
        %616 = vmatpush.xpose.msra.mxu0 0.0
        %617 = vmatpush.xpose.msra.mxu0 0.0
        %618 = vmatpush.xpose.msra.mxu0 0.0
        %619 = vmatpush.xpose.msra.mxu0 0.0
        %620 = vmatpush.xpose.msra.mxu0 0.0
        %621 = vmatpush.xpose.msra.mxu0 0.0
        %622 = vmatpush.xpose.msra.mxu0 0.0
        %623 = vmatpush.xpose.msra.mxu0 %v590
        %624 = vmatpush.xpose.msra.mxu0 %v588
        %625 = vmatpush.xpose.msra.mxu0 %v586
        %626 = vmatpush.xpose.msra.mxu0 %v584
        %627 = vmatmul.f32.gmra.mxu0 0.00390625
        %v628 = vpop.f32.mrf.mxu0
        %v629 = vadd.f32 %v609, %v628
        %630 = vdwg.mxu0
        %v632 = vsel %vm449, %v629, 0
        %634 = vmatpush.msra.mxu0 0.0
        %635 = vmatpush.msra.mxu0 0.0
        %636 = vmatpush.msra.mxu0 0.0
        %637 = vmatpush.msra.mxu0 0.0
        %638 = vmatpush.msra.mxu0 0.0
        %639 = vmatpush.msra.mxu0 0.0
        %640 = vmatpush.msra.mxu0 0.0
        %641 = vmatpush.msra.mxu0 0.0
        %642 = vmatpush.msra.mxu0 0.0
        %643 = vmatpush.msra.mxu0 0.0
        %644 = vmatpush.msra.mxu0 0.0
        %645 = vmatpush.msra.mxu0 0.0
        %646 = vmatpush.msra.mxu0 %v293
        %647 = vmatpush.msra.mxu0 %v292
        %648 = vmatpush.msra.mxu0 %v291
        %649 = vmatpush.msra.mxu0 %v290
        %650 = vmatmul.f32.gmra.mxu0 %v632
        %v651 = vpop.f32.mrf.mxu0
        %v652 = vadd.f32 %v294, %v651
        %653 = vdwg.mxu0
        %v654 = vmax.f32 %v652, 0.0
        %v656 = vsel %vm449, %v654, 0
        %658 = vmatpush.msra.mxu0 0.0
        %659 = vmatpush.msra.mxu0 0.0
        %660 = vmatpush.msra.mxu0 0.0
        %661 = vmatpush.msra.mxu0 0.0
        %662 = vmatpush.msra.mxu0 0.0
        %663 = vmatpush.msra.mxu0 0.0
        %664 = vmatpush.msra.mxu0 0.0
        %665 = vmatpush.msra.mxu0 0.0
        %666 = vmatpush.msra.mxu0 0.0
        %667 = vmatpush.msra.mxu0 0.0
        %668 = vmatpush.msra.mxu0 0.0
        %669 = vmatpush.msra.mxu0 0.0
        %670 = vmatpush.msra.mxu0 %v298
        %671 = vmatpush.msra.mxu0 %v297
        %672 = vmatpush.msra.mxu0 %v296
        %673 = vmatpush.msra.mxu0 %v295
        %674 = vmatmul.f32.gmra.mxu0 %v656
        %v675 = vpop.f32.mrf.mxu0
        %v676 = vadd.f32 %v299, %v675
        %677 = vdwg.mxu0
        %v678 = vmul.f32 %v676, %v676
        %v679 = vsel %vm498, %v678, 0.0
        %680 = vadd.xlane.f32.xlu0 %v679
        %v681 = vpop.xlane.xlu0 %680
        %v682 = vmax.f32 %v681, 1e-24
        %v683 = vrsqrt.pop %v682
        %v684 = vmul.f32 %v683, %v682
        %v685 = vmul.f32 %v684, %v683
        %v686 = vmul.f32 0.5, %v685
        %v687 = vsub.f32 1.5, %v686
        %v688 = vmul.f32 %v683, %v687
        %vm689 = vweird.f32 %v682
        %vm690 = vweird.f32 %v683
        %vm691 = vmor %vm689, %vm690
        %v692 = vsel %vm691, %v683, %v688
        %v693 = vmul.f32 %v676, %v692
        %694 = vst [vmem:[%s274 + $0x1] sm:$0x1] %v693
        %s695 = sand.u32 %s181, 1
        %s696 = scalar_lea.sflag [#allocation3], %s695
        %s697 = sand.u32 %s181, 1
        %s698 = smul.addr %s697, 2
        %s699 = scalar_lea.vmem [#allocation2], %s698
        // Predicated region
        $region49: #{supcon_forward.1} parent=47 // pred_check
          %p700 = pneg %p191
        $region50: #{supcon_forward.1} parent=47 // pred_check_branch
          %702 = sbr.rel (%p700) target = $region52
        $region51: #{supcon_forward.1} parent=47 // pred_region
          %704 = vsyncadd %s696, 0
          %s705 = smul.addr %s21, 2
          %s706 = scalar_lea.hbm %s7, %s705
          %s708 = sshll.u32 %s699, 4
          %s709 = int_to_ptr.vmem [resolvable:$true] %s708
          %s710 = sshll.u32 %s706, 4
          %s711 = int_to_ptr.hbm [resolvable:$true] %s710
          %713 = dma.vmem_to_hbm [thread:$0]  %s709, 32, %s711, %s696
        $region52: #{supcon_forward.1} parent=47 // pred_fallthru
          _
      $region48: #{supcon_forward.1} parent=5 // pred_fallthru
        _
      %p714 = scmp.le.s32.totalorder 2, %s16
      // Predicated region
      $region53: #{supcon_forward.1} parent=5 // pred_check
        %p715 = pneg %p714
      $region54: #{supcon_forward.1} parent=5 // pred_check_branch
        %717 = sbr.rel (%p715) target = $region56
      $region55: #{supcon_forward.1} parent=5 // pred_region
        %s718 = ssub.s32 %s16, 2
        // Predicated region
        $region57: #{supcon_forward.1} parent=55 // pred_check
          %p719 = pneg %p197
        $region58: #{supcon_forward.1} parent=55 // pred_check_branch
          %721 = sbr.rel (%p719) target = $region60
        $region59: #{supcon_forward.1} parent=55 // pred_region
          %s722 = sand.u32 %s182, 1
          %s723 = scalar_lea.sflag [#allocation3], %s722
          %s724 = sand.u32 %s182, 1
          %s725 = smul.addr %s724, 2
          %s726 = scalar_lea.vmem [#allocation2], %s725
          %728 = dma.done %s723, 32
        $region60: #{supcon_forward.1} parent=55 // pred_fallthru
          _
      $region56: #{supcon_forward.1} parent=5 // pred_fallthru
        _
    $region6: #{supcon_forward.1} parent=1 // loop_footer
      %s20 = sadd.s32 1, %s16
    $region7: #{supcon_forward.1} parent=1 // loop_footer_branch
      %15 = sbr.rel target = $region3
    $region8: #{supcon_forward.1} parent=1 // loop_exit
      _
    %729 = vsyncpa [#allocation3], 1
    %s730 = scalar_lea.sflag [#allocation3], 1
    %731 = vsyncpa %s730, 1

</llo_original>
